<compile_context>
chip_gen: v6e
topology: v6e:2x2x1
jax: 0.10.0
libtpu: 0.0.40
codegen_flags: <defaults>
</compile_context>

<pallas_src>
import functools

import jax
import jax.numpy as jnp
from jax import lax
from jax.experimental import pallas as pl
from jax.experimental.pallas import tpu as pltpu


# ----------------------------- Pallas kernel -------------------------------

def ttq_conv_kernel(scal_ref, patches_ref, wn_ref, b_ref, out_ref, tw_ref):
    """One M-tile of the im2col GEMM with hoisted TTQ weight ternarization.

    scal_ref:    SMEM (3,) f32        -> [threshold, alpha_p, alpha_n]
    patches_ref: VMEM (TM, K)         -> im2col patch rows
    wn_ref:      VMEM (K, Cout_pad)   -> normalized weights, pre-transposed,
                                         zero-padded on the Cout axis
    b_ref:       VMEM (1, Cout_pad)   -> bias row (zeros where bias=False/pad)
    out_ref:     VMEM (TM, Cout_pad)
    tw_ref:      VMEM (K, Cout_pad) scratch -> ternarized weights (resident)
    """
    # Ternarize once; the weight block is grid-invariant (index_map (0,0)),
    # so all subsequent M tiles reuse the scratch.
    @pl.when(pl.program_id(0) == 0)
    def _():
        thr = scal_ref[0]
        alpha_p = scal_ref[1]
        alpha_n = scal_ref[2]
        wn = wn_ref[...]
        # TTQ: +alpha_p where w_norm > t, -alpha_n where w_norm < -t, else 0.
        # (Zero-padded Cout columns stay exactly 0.)
        tw_ref[...] = jnp.where(
            wn > thr, alpha_p,
            jnp.where(wn < -thr, -alpha_n, jnp.zeros_like(wn)))

    acc = jnp.dot(patches_ref[...], tw_ref[...],
                  preferred_element_type=jnp.float32)
    out_ref[...] = (acc + b_ref[...]).astype(out_ref.dtype)


# ------------------------------ JAX wrapper ---------------------------------

def _im2col_nchw(x, k, stride, padding):
    """x: (N, C, H, W) -> (N*OH*OW, C*k*k) patch matrix (C, kh, kw order)."""
    N, C, H, W = x.shape
    OH = (H + 2 * padding - k) // stride + 1
    OW = (W + 2 * padding - k) // stride + 1
    xp = jnp.pad(x, ((0, 0), (0, 0), (padding, padding), (padding, padding)))
    cols = []
    for kh in range(k):
        for kw in range(k):
            cols.append(xp[:, :,
                           kh:kh + (OH - 1) * stride + 1:stride,
                           kw:kw + (OW - 1) * stride + 1:stride])
    # (k*k, N, C, OH, OW) -> (N, OH, OW, C, k, k)
    pat = jnp.stack(cols, axis=0).reshape(k, k, N, C, OH, OW)
    pat = pat.transpose(2, 4, 5, 3, 0, 1)
    return pat.reshape(N * OH * OW, C * k * k), OH, OW


@functools.partial(jax.jit, static_argnames=("kernel_size", "stride", "padding"))
def ttq_conv2d(x, weight, alpha_p, alpha_n, bias, *,
               kernel_size, stride=1, padding=0):
    """Forward pass of TTQConv2d.

    x:       (N, C, H, W) float32
    weight:  (Cout, C, k, k) float32
    alpha_p: (1,) float32   (positive scale parameter)
    alpha_n: (1,) float32   (negative scale parameter)
    bias:    (Cout,) float32 or None
    returns  (N, Cout, OH, OW) float32
    """
    N, C, H, W = x.shape
    Cout = weight.shape[0]
    k = kernel_size

    # ---- parameter glue (tiny): max-abs normalization + scalars ----
    max_w = jnp.max(jnp.abs(weight))
    w_norm = jnp.where(max_w > 0, weight / max_w, weight)
    t = jnp.float32(0.05)
    scal = jnp.stack([t,
                      alpha_p.reshape(()).astype(jnp.float32),
                      alpha_n.reshape(()).astype(jnp.float32)]
                     ).astype(jnp.float32)                     # (3,) -> SMEM

    # ---- im2col (layout plumbing) ----
    patches, OH, OW = _im2col_nchw(x, k, stride, padding)      # (M, K)
    M, Kdim = patches.shape

    # ---- pre-transposed, lane-dense-padded weights & bias ----
    LANE = 128
    Cout_pad = ((Cout + LANE - 1) // LANE) * LANE
    wn_t = w_norm.reshape(Cout, Kdim).T.astype(jnp.float32)    # (K, Cout)
    wn_t = jnp.pad(wn_t, ((0, 0), (0, Cout_pad - Cout)))       # (K, Cout_pad)
    b_row = jnp.zeros((1, Cout_pad), jnp.float32)
    if bias is not None:
        b_row = b_row.at[0, :Cout].set(bias.astype(jnp.float32))

    # ---- tile the GEMM M dimension (biggest tile that fits; test = 1 step) ----
    TM = max(8, min(512, ((M + 7) // 8) * 8))
    M_pad = ((M + TM - 1) // TM) * TM
    if M_pad != M:
        patches = jnp.pad(patches, ((0, M_pad - M), (0, 0)))

    out_flat = pl.pallas_call(
        ttq_conv_kernel,
        out_shape=jax.ShapeDtypeStruct((M_pad, Cout_pad), jnp.float32),
        grid_spec=pltpu.PrefetchScalarGridSpec(
            num_scalar_prefetch=0,
            grid=(M_pad // TM,),
            in_specs=[
                pl.BlockSpec(memory_space=pltpu.SMEM),            # scal (3,)
                pl.BlockSpec((TM, Kdim), lambda i: (i, 0)),       # patches
                pl.BlockSpec((Kdim, Cout_pad), lambda i: (0, 0)), # weights (K, Cout_pad)
                pl.BlockSpec((1, Cout_pad), lambda i: (0, 0)),    # bias row
            ],
            out_specs=pl.BlockSpec((TM, Cout_pad), lambda i: (i, 0)),
            scratch_shapes=[pltpu.VMEM((Kdim, Cout_pad), jnp.float32)],
        ),
        # "arbitrary": the hoisted ternary-weight scratch is written only at
        # grid step 0; megacore sharding ("parallel") would leave the second
        # core's scratch uninitialized.
        compiler_params=pltpu.CompilerParams(
            dimension_semantics=("arbitrary",)),
    )(scal, patches, wn_t, b_row)

    out_flat = out_flat[:M, :Cout]                             # drop padding
    out = out_flat.reshape(N, OH, OW, Cout).transpose(0, 3, 1, 2)
    return out


# ------------------------------ reference -----------------------------------

def ttq_conv2d_ref(x, weight, alpha_p, alpha_n, bias, *,
                   kernel_size, stride=1, padding=0):
    max_w = jnp.max(jnp.abs(weight))
    w_norm = jnp.where(max_w > 0, weight / max_w, weight)
    t = 0.05
    ap = alpha_p.reshape(())
    an = alpha_n.reshape(())
    # Forward value of the STE construction is just the ternary weight.
    tw = jnp.where(w_norm > t, ap,
                   jnp.where(w_norm < -t, -an, jnp.zeros_like(w_norm)))
    out = lax.conv_general_dilated(
        x, tw, window_strides=(stride, stride),
        padding=[(padding, padding), (padding, padding)],
        dimension_numbers=("NCHW", "OIHW", "NCHW"))
    if bias is not None:
        out = out + bias.reshape(1, -1, 1, 1)
    return out


# -------------------------------- main ---------------------------------------

if __name__ == "__main__":
    # Module config: TTQConv2d(in_channels=4, out_channels=8, kernel_size=3,
    #                          stride=1, padding=1, bias=False)
    N, C, H, W = 2, 4, 16, 16
    Cout, K, STRIDE, PAD = 8, 3, 1, 1

    key = jax.random.PRNGKey(0)
    kx, kw = jax.random.split(key)
    x = jax.random.normal(kx, (N, C, H, W), dtype=jnp.float32)
    weight = jax.random.normal(kw, (Cout, C, K, K), dtype=jnp.float32)  # torch.randn analogue
    alpha_p = jnp.ones((1,), jnp.float32)   # nn.Parameter(torch.ones(1))
    alpha_n = jnp.ones((1,), jnp.float32)   # nn.Parameter(torch.ones(1))
    bias = None                             # bias=False in the module default

    out = ttq_conv2d(x, weight, alpha_p, alpha_n, bias,
                     kernel_size=K, stride=STRIDE, padding=PAD)
    out = jax.block_until_ready(out)

    ref = ttq_conv2d_ref(x, weight, alpha_p, alpha_n, bias,
                         kernel_size=K, stride=STRIDE, padding=PAD)
    assert out.shape == (N, Cout, H, W), out.shape
    assert jnp.allclose(out, ref, atol=1e-4, rtol=1e-4), \
        float(jnp.max(jnp.abs(out - ref)))

    print("KERNEL_OK")
</pallas_src>

<mosaic_0001>
module attributes {stable_mosaic.version = 11 : i64} {
  func.func @ttq_conv_kernel(%arg0: i32, %arg1: memref<3xf32, #tpu.memory_space<smem>>, %arg2: memref<512x36xf32, #tpu.memory_space<vmem>>, %arg3: memref<36x128xf32, #tpu.memory_space<vmem>>, %arg4: memref<1x128xf32, #tpu.memory_space<vmem>>, %arg5: memref<512x128xf32, #tpu.memory_space<vmem>>, %arg6: memref<36x128xf32, #tpu.memory_space<vmem>>) attributes {dimension_semantics = [#tpu.dimension_semantics<arbitrary>], iteration_bounds = array<i64: 1>, scalar_prefetch = 0 : i64, scratch_operands = 1 : i64, tpu.core_type = #tpu.core_type<tc>, window_params = [{transform_indices = @transform_0, window_bounds = array<i64: 3>}, {transform_indices = @transform_1, window_bounds = array<i64: 512, 36>}, {pipeline_mode = #tpu.pipeline_mode<synchronous>, transform_indices = @transform_2, window_bounds = array<i64: 36, 128>}, {pipeline_mode = #tpu.pipeline_mode<synchronous>, transform_indices = @transform_3, window_bounds = array<i64: 1, 128>}, {transform_indices = @transform_4, window_bounds = array<i64: 512, 128>}]} {
    %c0_i32 = arith.constant 0 : i32
    %0 = arith.cmpi eq, %arg0, %c0_i32 : i32
    %1 = arith.extui %0 : i1 to i32
    %c0_i32_0 = arith.constant 0 : i32
    %2 = arith.cmpi ne, %1, %c0_i32_0 : i32
    scf.if %2 {
      %c0_8 = arith.constant 0 : index
      %10 = memref.load %arg1[%c0_8] : memref<3xf32, #tpu.memory_space<smem>>
      %c1 = arith.constant 1 : index
      %11 = memref.load %arg1[%c1] : memref<3xf32, #tpu.memory_space<smem>>
      %c2 = arith.constant 2 : index
      %12 = memref.load %arg1[%c2] : memref<3xf32, #tpu.memory_space<smem>>
      %c0_9 = arith.constant 0 : index
      %c0_10 = arith.constant 0 : index
      %13 = vector.load %arg3[%c0_9, %c0_10] : memref<36x128xf32, #tpu.memory_space<vmem>>, vector<36x128xf32>
      %14 = vector.broadcast %10 : f32 to vector<36x128xf32>
      %15 = arith.cmpf ogt, %13, %14 : vector<36x128xf32>
      %cst_11 = arith.constant 0.000000e+00 : f32
      %16 = arith.subf %cst_11, %10 : f32
      %17 = vector.broadcast %16 : f32 to vector<36x128xf32>
      %18 = arith.cmpf olt, %13, %17 : vector<36x128xf32>
      %cst_12 = arith.constant 0.000000e+00 : f32
      %19 = arith.subf %cst_12, %12 : f32
      %cst_13 = arith.constant 0.000000e+00 : f32
      %20 = vector.broadcast %cst_13 : f32 to vector<36x128xf32>
      %21 = vector.broadcast %19 : f32 to vector<36x128xf32>
      %22 = arith.select %18, %21, %20 : vector<36x128xi1>, vector<36x128xf32>
      %23 = vector.broadcast %11 : f32 to vector<36x128xf32>
      %24 = arith.select %15, %23, %22 : vector<36x128xi1>, vector<36x128xf32>
      %c0_14 = arith.constant 0 : index
      %c0_15 = arith.constant 0 : index
      %25 = vector.load %arg6[%c0_14, %c0_15] : memref<36x128xf32, #tpu.memory_space<vmem>>, vector<36x128xf32>
      tpu.vector_store %arg6[%c0_14, %c0_15], %24 {strides = array<i32>} : memref<36x128xf32, #tpu.memory_space<vmem>>, vector<36x128xf32>,
    } else {
    }
    %c0 = arith.constant 0 : index
    %c0_1 = arith.constant 0 : index
    %3 = vector.load %arg2[%c0, %c0_1] : memref<512x36xf32, #tpu.memory_space<vmem>>, vector<512x36xf32>
    %c0_2 = arith.constant 0 : index
    %c0_3 = arith.constant 0 : index
    %4 = vector.load %arg6[%c0_2, %c0_3] : memref<36x128xf32, #tpu.memory_space<vmem>>, vector<36x128xf32>
    %cst = arith.constant dense<0.000000e+00> : vector<512x128xf32>
    %5 = tpu.matmul %3, %4, %cst {dimension_numbers = #tpu.dot_dimension_numbers<[1], [0], [0], [1], [0, 0, 1, 1], [], []>} : vector<512x36xf32>, vector<36x128xf32>, vector<512x128xf32> -> vector<512x128xf32>
    %c0_4 = arith.constant 0 : index
    %c0_5 = arith.constant 0 : index
    %6 = vector.load %arg4[%c0_4, %c0_5] : memref<1x128xf32, #tpu.memory_space<vmem>>, vector<1x128xf32>
    %7 = vector.broadcast %6 : vector<1x128xf32> to vector<512x128xf32>
    %8 = arith.addf %5, %7 : vector<512x128xf32>
    %c0_6 = arith.constant 0 : index
    %c0_7 = arith.constant 0 : index
    %9 = vector.load %arg5[%c0_6, %c0_7] : memref<512x128xf32, #tpu.memory_space<vmem>>, vector<512x128xf32>
    tpu.vector_store %arg5[%c0_6, %c0_7], %8 {strides = array<i32>} : memref<512x128xf32, #tpu.memory_space<vmem>>, vector<512x128xf32>,
    return
  }
  func.func @transform_0(%arg0: i32) -> i32 {
    %c0_i32 = arith.constant 0 : i32
    %c0_i32_0 = arith.constant 0 : i32
    return %c0_i32 : i32
  }
  func.func @transform_1(%arg0: i32) -> (i32, i32) {
    %c0_i32 = arith.constant 0 : i32
    %c0_i32_0 = arith.constant 0 : i32
    return %arg0, %c0_i32 : i32, i32
  }
  func.func @transform_2(%arg0: i32) -> (i32, i32) {
    %c0_i32 = arith.constant 0 : i32
    %c0_i32_0 = arith.constant 0 : i32
    %c0_i32_1 = arith.constant 0 : i32
    return %c0_i32, %c0_i32_0 : i32, i32
  }
  func.func @transform_3(%arg0: i32) -> (i32, i32) {
    %c0_i32 = arith.constant 0 : i32
    %c0_i32_0 = arith.constant 0 : i32
    %c0_i32_1 = arith.constant 0 : i32
    return %c0_i32, %c0_i32_0 : i32, i32
  }
  func.func @transform_4(%arg0: i32) -> (i32, i32) {
    %c0_i32 = arith.constant 0 : i32
    %c0_i32_0 = arith.constant 0 : i32
    return %arg0, %c0_i32 : i32, i32
  }
}

</mosaic_0001>

<llo_original>
// kernel: ttq_conv2d.1
$region0: #{ttq_conv2d.1}
  #allocation0 [shape = 'u32[]', space=smem, size = 0x4, offset = 0x4, fixed_abs, tag = 'smem constant byte address 0x4 - core index']
  #allocation1 [shape = 'u32[144,128]{1,0:T(1,128)}', space=vmem, size = 0x12000, scoped, tag = 'internal scratch']
  #allocation2 [shape = 'f32[36,128]{1,0:T(8,128)}', space=vmem, size = 0x5000, scoped, tag = 'scratch operand']
  %s0 = inlined_call_operand.vmem [shape: f32[3], index: 0, kind: input, shape index: {}]
  %s1 = inlined_call_operand.vmem [shape: f32[512,36], index: 1, kind: input, shape index: {}]
  %s2 = inlined_call_operand.vmem [shape: f32[36,128], index: 2, kind: input, shape index: {}]
  %s3 = inlined_call_operand.vmem [shape: f32[1,128], index: 3, kind: input, shape index: {}]
  %s4 = inlined_call_operand.vmem [shape: f32[512,128], index: 4, kind: output, shape index: {}]
  %s5 = sld [smem:[#allocation0]]
  $region34: #{ttq_conv2d.1} parent=0
    _
  %s7 = ssub.s32 1, %s5
  %s8 = scalar_select 0, %s7, %s5
  $region1: #{ttq_conv2d.1} parent=0
    #allocation3 [shape = 'u8[512]{0}', space=smem, size = 0x200, scoped, tag = 'input window, operand 0, single buffered']
    #allocation4 [shape = 's32[1]{0}', space=sflag, size = 0x4, scoped, tag = 'scoped memory for ttq_conv2d.1']
    %9 = vsyncpa [#allocation4], 0
    // Predicated region
    $region2: #{ttq_conv2d.1} parent=1 // pred_check
      _
    $region3: #{ttq_conv2d.1} parent=1 // pred_check_branch
      %11 = sbr.rel (0) target = $region5
    $region4: #{ttq_conv2d.1} parent=1 // pred_region
      %s13 = ssub.s32 16, 16
      %14 = vsyncadd [#allocation4], %s13
      %s16 = sshll.u32 %s0, 4
      %s17 = int_to_ptr.vmem [resolvable:$true] %s16
      %19 = dma.vmem_to_smem %s17, 16, [#allocation3], [#allocation4]
    $region5: #{ttq_conv2d.1} parent=1 // pred_fallthru
      _
    // Predicated region
    $region6: #{ttq_conv2d.1} parent=1 // pred_check
      _
    $region7: #{ttq_conv2d.1} parent=1 // pred_check_branch
      %21 = sbr.rel (0) target = $region9
    $region8: #{ttq_conv2d.1} parent=1 // pred_region
      _
    $region9: #{ttq_conv2d.1} parent=1 // pred_fallthru
      _
    // Predicated region
    $region10: #{ttq_conv2d.1} parent=1 // pred_check
      _
    $region11: #{ttq_conv2d.1} parent=1 // pred_check_branch
      %23 = sbr.rel (0) target = $region13
    $region12: #{ttq_conv2d.1} parent=1 // pred_region
      _
    $region13: #{ttq_conv2d.1} parent=1 // pred_fallthru
      _
    // Predicated region
    $region14: #{ttq_conv2d.1} parent=1 // pred_check
      _
    $region15: #{ttq_conv2d.1} parent=1 // pred_check_branch
      %25 = sbr.rel (0) target = $region17
    $region16: #{ttq_conv2d.1} parent=1 // pred_region
      _
    $region17: #{ttq_conv2d.1} parent=1 // pred_fallthru
      _
    // Predicated region
    $region18: #{ttq_conv2d.1} parent=1 // pred_check
      _
    $region19: #{ttq_conv2d.1} parent=1 // pred_check_branch
      %27 = sbr.rel (0) target = $region21
    $region20: #{ttq_conv2d.1} parent=1 // pred_region
      %28 = dma.done [#allocation4], 16
    $region21: #{ttq_conv2d.1} parent=1 // pred_fallthru
      _
    %29 = sfence
    %p30 = scmp.eq.s32.totalorder 0, 0
    // Predicated region
    $region22: #{ttq_conv2d.1} parent=1 // pred_check
      %p31 = pneg %p30
    $region23: #{ttq_conv2d.1} parent=1 // pred_check_branch
      %33 = sbr.rel (%p31) target = $region25
    $region24: #{ttq_conv2d.1} parent=1 // pred_region
      %s34 = sld [smem:[#allocation3]]
      %s35 = sld [smem:[#allocation3 + $0x1]]
      %s36 = sld [smem:[#allocation3 + $0x2]]
      %v37 = vld [vmem:[%s2] sm:$0xff]
      %v38 = vld [vmem:[%s2 + $0x8] sm:$0xff]
      %v39 = vld [vmem:[%s2 + $0x10] sm:$0xff]
      %v40 = vld [vmem:[%s2 + $0x18] sm:$0xff]
      %v41 = vld [vmem:[%s2 + $0x20] sm:$0xf]
      %v42 = vstv %s34
      %vm43 = vcmp.gt.f32.partialorder %v37, %v42
      %vm44 = vcmp.gt.f32.partialorder %v38, %v42
      %vm45 = vcmp.gt.f32.partialorder %v39, %v42
      %vm46 = vcmp.gt.f32.partialorder %v40, %v42
      %vm47 = vcmp.gt.f32.partialorder %v41, %v42
      %s48 = ssub.f32 0.0, %s34
      %v49 = vstv %s48
      %vm50 = vcmp.lt.f32.partialorder %v37, %v49
      %vm51 = vcmp.lt.f32.partialorder %v38, %v49
      %vm52 = vcmp.lt.f32.partialorder %v39, %v49
      %vm53 = vcmp.lt.f32.partialorder %v40, %v49
      %vm54 = vcmp.lt.f32.partialorder %v41, %v49
      %s55 = ssub.f32 0.0, %s36
      %v56 = vstv %s55
      %v57 = vsel %vm50, %v56, 0.0
      %v58 = vsel %vm51, %v56, 0.0
      %v59 = vsel %vm52, %v56, 0.0
      %v60 = vsel %vm53, %v56, 0.0
      %v61 = vsel %vm54, %v56, 0.0
      %v62 = vstv %s35
      %v63 = vsel %vm43, %v62, %v57
      %v64 = vsel %vm44, %v62, %v58
      %v65 = vsel %vm45, %v62, %v59
      %v66 = vsel %vm46, %v62, %v60
      %v67 = vsel %vm47, %v62, %v61
      %68 = vst [vmem:[#allocation2] sm:$0xff] %v63
      %69 = vst [vmem:[#allocation2 + $0x8] sm:$0xff] %v64
      %70 = vst [vmem:[#allocation2 + $0x10] sm:$0xff] %v65
      %71 = vst [vmem:[#allocation2 + $0x18] sm:$0xff] %v66
      %72 = vst [vmem:[#allocation2 + $0x20] sm:$0xf] %v67
    $region25: #{ttq_conv2d.1} parent=1 // pred_fallthru
      _
    %v73 = vld [vmem:[%s1] sm:$0xff]
    %v74 = vld [vmem:[%s1 + $0x8] sm:$0xff]
    %v75 = vld [vmem:[%s1 + $0x10] sm:$0xff]
    %v76 = vld [vmem:[%s1 + $0x18] sm:$0xff]
    %v77 = vld [vmem:[%s1 + $0x20] sm:$0xff]
    %v78 = vld [vmem:[%s1 + $0x28] sm:$0xff]
    %v79 = vld [vmem:[%s1 + $0x30] sm:$0xff]
    %v80 = vld [vmem:[%s1 + $0x38] sm:$0xff]
    %v81 = vld [vmem:[%s1 + $0x40] sm:$0xff]
    %v82 = vld [vmem:[%s1 + $0x48] sm:$0xff]
    %v83 = vld [vmem:[%s1 + $0x50] sm:$0xff]
    %v84 = vld [vmem:[%s1 + $0x58] sm:$0xff]
    %v85 = vld [vmem:[%s1 + $0x60] sm:$0xff]
    %v86 = vld [vmem:[%s1 + $0x68] sm:$0xff]
    %v87 = vld [vmem:[%s1 + $0x70] sm:$0xff]
    %v88 = vld [vmem:[%s1 + $0x78] sm:$0xff]
    %v89 = vld [vmem:[%s1 + $0x80] sm:$0xff]
    %v90 = vld [vmem:[%s1 + $0x88] sm:$0xff]
    %v91 = vld [vmem:[%s1 + $0x90] sm:$0xff]
    %v92 = vld [vmem:[%s1 + $0x98] sm:$0xff]
    %v93 = vld [vmem:[%s1 + $0xa0] sm:$0xff]
    %v94 = vld [vmem:[%s1 + $0xa8] sm:$0xff]
    %v95 = vld [vmem:[%s1 + $0xb0] sm:$0xff]
    %v96 = vld [vmem:[%s1 + $0xb8] sm:$0xff]
    %v97 = vld [vmem:[%s1 + $0xc0] sm:$0xff]
    %v98 = vld [vmem:[%s1 + $0xc8] sm:$0xff]
    %v99 = vld [vmem:[%s1 + $0xd0] sm:$0xff]
    %v100 = vld [vmem:[%s1 + $0xd8] sm:$0xff]
    %v101 = vld [vmem:[%s1 + $0xe0] sm:$0xff]
    %v102 = vld [vmem:[%s1 + $0xe8] sm:$0xff]
    %v103 = vld [vmem:[%s1 + $0xf0] sm:$0xff]
    %v104 = vld [vmem:[%s1 + $0xf8] sm:$0xff]
    %v105 = vld [vmem:[%s1 + $0x100] sm:$0xff]
    %v106 = vld [vmem:[%s1 + $0x108] sm:$0xff]
    %v107 = vld [vmem:[%s1 + $0x110] sm:$0xff]
    %v108 = vld [vmem:[%s1 + $0x118] sm:$0xff]
    %v109 = vld [vmem:[%s1 + $0x120] sm:$0xff]
    %v110 = vld [vmem:[%s1 + $0x128] sm:$0xff]
    %v111 = vld [vmem:[%s1 + $0x130] sm:$0xff]
    %v112 = vld [vmem:[%s1 + $0x138] sm:$0xff]
    %v113 = vld [vmem:[%s1 + $0x140] sm:$0xff]
    %v114 = vld [vmem:[%s1 + $0x148] sm:$0xff]
    %v115 = vld [vmem:[%s1 + $0x150] sm:$0xff]
    %v116 = vld [vmem:[%s1 + $0x158] sm:$0xff]
    %v117 = vld [vmem:[%s1 + $0x160] sm:$0xff]
    %v118 = vld [vmem:[%s1 + $0x168] sm:$0xff]
    %v119 = vld [vmem:[%s1 + $0x170] sm:$0xff]
    %v120 = vld [vmem:[%s1 + $0x178] sm:$0xff]
    %v121 = vld [vmem:[%s1 + $0x180] sm:$0xff]
    %v122 = vld [vmem:[%s1 + $0x188] sm:$0xff]
    %v123 = vld [vmem:[%s1 + $0x190] sm:$0xff]
    %v124 = vld [vmem:[%s1 + $0x198] sm:$0xff]
    %v125 = vld [vmem:[%s1 + $0x1a0] sm:$0xff]
    %v126 = vld [vmem:[%s1 + $0x1a8] sm:$0xff]
    %v127 = vld [vmem:[%s1 + $0x1b0] sm:$0xff]
    %v128 = vld [vmem:[%s1 + $0x1b8] sm:$0xff]
    %v129 = vld [vmem:[%s1 + $0x1c0] sm:$0xff]
    %v130 = vld [vmem:[%s1 + $0x1c8] sm:$0xff]
    %v131 = vld [vmem:[%s1 + $0x1d0] sm:$0xff]
    %v132 = vld [vmem:[%s1 + $0x1d8] sm:$0xff]
    %v133 = vld [vmem:[%s1 + $0x1e0] sm:$0xff]
    %v134 = vld [vmem:[%s1 + $0x1e8] sm:$0xff]
    %v135 = vld [vmem:[%s1 + $0x1f0] sm:$0xff]
    %v136 = vld [vmem:[%s1 + $0x1f8] sm:$0xff]
    %v137 = vld [vmem:[#allocation2] sm:$0xff]
    %v138 = vld [vmem:[#allocation2 + $0x8] sm:$0xff]
    %v139 = vld [vmem:[#allocation2 + $0x10] sm:$0xff]
    %v140 = vld [vmem:[#allocation2 + $0x18] sm:$0xff]
    %v141 = vld [vmem:[#allocation2 + $0x20] sm:$0xf]
    %v142 = vld [vmem:[%s3] sm:$0x1]
    %v144 = vlaneseq
    %v145 = vshrl.u32 %v144, 7
    %v146 = vsub.s32 0, %v145
    %v147 = vrot.slane %v142, %v146
    %vm149 = vcmask 293888
    %v151 = vsel %vm149, %v73, 0
    %v154 = vsel %vm149, %v74, 0
    %v157 = vsel %vm149, %v75, 0
    %v160 = vsel %vm149, %v76, 0
    %v163 = vsel %vm149, %v77, 0
    %v166 = vsel %vm149, %v78, 0
    %v169 = vsel %vm149, %v79, 0
    %v172 = vsel %vm149, %v80, 0
    %v175 = vsel %vm149, %v81, 0
    %v178 = vsel %vm149, %v82, 0
    %v181 = vsel %vm149, %v83, 0
    %v184 = vsel %vm149, %v84, 0
    %v187 = vsel %vm149, %v85, 0
    %v190 = vsel %vm149, %v86, 0
    %v193 = vsel %vm149, %v87, 0
    %v196 = vsel %vm149, %v88, 0
    %v199 = vsel %vm149, %v89, 0
    %v202 = vsel %vm149, %v90, 0
    %v205 = vsel %vm149, %v91, 0
    %v208 = vsel %vm149, %v92, 0
    %v211 = vsel %vm149, %v93, 0
    %v214 = vsel %vm149, %v94, 0
    %v217 = vsel %vm149, %v95, 0
    %v220 = vsel %vm149, %v96, 0
    %v223 = vsel %vm149, %v97, 0
    %v226 = vsel %vm149, %v98, 0
    %v229 = vsel %vm149, %v99, 0
    %v232 = vsel %vm149, %v100, 0
    %v235 = vsel %vm149, %v101, 0
    %v238 = vsel %vm149, %v102, 0
    %v241 = vsel %vm149, %v103, 0
    %v244 = vsel %vm149, %v104, 0
    %v247 = vsel %vm149, %v105, 0
    %v250 = vsel %vm149, %v106, 0
    %v253 = vsel %vm149, %v107, 0
    %v256 = vsel %vm149, %v108, 0
    %v259 = vsel %vm149, %v109, 0
    %v262 = vsel %vm149, %v110, 0
    %v265 = vsel %vm149, %v111, 0
    %v268 = vsel %vm149, %v112, 0
    %v271 = vsel %vm149, %v113, 0
    %v274 = vsel %vm149, %v114, 0
    %v277 = vsel %vm149, %v115, 0
    %v280 = vsel %vm149, %v116, 0
    %v283 = vsel %vm149, %v117, 0
    %v286 = vsel %vm149, %v118, 0
    %v289 = vsel %vm149, %v119, 0
    %v292 = vsel %vm149, %v120, 0
    %v295 = vsel %vm149, %v121, 0
    %v298 = vsel %vm149, %v122, 0
    %v301 = vsel %vm149, %v123, 0
    %v304 = vsel %vm149, %v124, 0
    %v307 = vsel %vm149, %v125, 0
    %v310 = vsel %vm149, %v126, 0
    %v313 = vsel %vm149, %v127, 0
    %v316 = vsel %vm149, %v128, 0
    %v319 = vsel %vm149, %v129, 0
    %v322 = vsel %vm149, %v130, 0
    %v325 = vsel %vm149, %v131, 0
    %v328 = vsel %vm149, %v132, 0
    %v331 = vsel %vm149, %v133, 0
    %v334 = vsel %vm149, %v134, 0
    %v337 = vsel %vm149, %v135, 0
    %v340 = vsel %vm149, %v136, 0
    %vm342 = vcmask 1043456
    %v344 = vsel %vm342, %v141, 0
    %346 = vmatprep.subr.mxu0 0.0
    %347 = vmatpush1.msra.mxu0 0.0
    %348 = vmatprep.subr.mxu0 0.0
    %349 = vmatpush1.msra.mxu0 0.0
    %350 = vmatprep.subr.mxu0 0.0
    %351 = vmatpush1.msra.mxu0 0.0
    %352 = vmatprep.subr.mxu0 0.0
    %353 = vmatpush1.msra.mxu0 0.0
    %354 = vmatprep.subr.mxu0 0.0
    %355 = vmatpush1.msra.mxu0 0.0
    %356 = vmatprep.subr.mxu0 0.0
    %357 = vmatpush1.msra.mxu0 0.0
    %358 = vmatprep.subr.mxu0 0.0
    %359 = vmatpush1.msra.mxu0 0.0
    %360 = vmatprep.subr.mxu0 0.0
    %361 = vmatpush1.msra.mxu0 0.0
    %362 = vmatprep.subr.mxu0 0.0
    %363 = vmatpush1.msra.mxu0 0.0
    %364 = vmatprep.subr.mxu0 0.0
    %365 = vmatpush1.msra.mxu0 0.0
    %366 = vmatprep.subr.mxu0 0.0
    %367 = vmatpush1.msra.mxu0 0.0
    %368 = vmatprep.subr.mxu0 0.0
    %369 = vmatpush1.msra.mxu0 %v344
    %370 = vmatprep.subr.mxu0 0.0
    %371 = vmatpush1.msra.mxu0 %v140
    %372 = vmatprep.subr.mxu0 0.0
    %373 = vmatpush1.msra.mxu0 %v139
    %374 = vmatprep.subr.mxu0 0.0
    %375 = vmatpush1.msra.mxu0 %v138
    %376 = vmatprep.subr.mxu0 0.0
    %377 = vmatpush1.msra.mxu0 %v137
    %378 = vmatprep.subr.mxu0 0.0
    %379 = vmatpush2.msra.mxu0 0.0
    %380 = vmatprep.subr.mxu0 0.0
    %381 = vmatpush2.msra.mxu0 0.0
    %382 = vmatprep.subr.mxu0 0.0
    %383 = vmatpush2.msra.mxu0 0.0
    %384 = vmatprep.subr.mxu0 0.0
    %385 = vmatpush2.msra.mxu0 0.0
    %386 = vmatprep.subr.mxu0 0.0
    %387 = vmatpush2.msra.mxu0 0.0
    %388 = vmatprep.subr.mxu0 0.0
    %389 = vmatpush2.msra.mxu0 0.0
    %390 = vmatprep.subr.mxu0 0.0
    %391 = vmatpush2.msra.mxu0 0.0
    %392 = vmatprep.subr.mxu0 0.0
    %393 = vmatpush2.msra.mxu0 0.0
    %394 = vmatprep.subr.mxu0 0.0
    %395 = vmatpush2.msra.mxu0 0.0
    %396 = vmatprep.subr.mxu0 0.0
    %397 = vmatpush2.msra.mxu0 0.0
    %398 = vmatprep.subr.mxu0 0.0
    %399 = vmatpush2.msra.mxu0 0.0
    %400 = vmatprep.subr.mxu0 0.0
    %401 = vmatpush2.msra.mxu0 0.0
    %402 = vmatprep.subr.mxu0 0.0
    %403 = vmatpush2.msra.mxu0 0.0
    %404 = vmatprep.subr.mxu0 0.0
    %405 = vmatpush2.msra.mxu0 0.0
    %406 = vmatprep.subr.mxu0 0.0
    %407 = vmatpush2.msra.mxu0 0.0
    %408 = vmatprep.subr.mxu0 0.0
    %409 = vmatpush2.msra.mxu0 0.0
    %410 = vmatprep.mubr.f32.mxu0 0.0
    %411 = vmatmul.mubr.f32.gmra.mxu0 %v151
    %v412 = vpop.f32.mrf.mxu0
    %v413 = vadd.f32 %v147, %v412
    %v414 = vpop.f32.mrf.mxu0
    %415 = vmatprep.mubr.f32.mxu0 0.0
    %416 = vmatmul.mubr.f32.gmra.mxu0 %v154
    %v417 = vpop.f32.mrf.mxu0
    %v418 = vadd.f32 %v147, %v417
    %v419 = vpop.f32.mrf.mxu0
    %420 = vmatprep.mubr.f32.mxu0 0.0
    %421 = vmatmul.mubr.f32.gmra.mxu0 %v157
    %v422 = vpop.f32.mrf.mxu0
    %v423 = vadd.f32 %v147, %v422
    %v424 = vpop.f32.mrf.mxu0
    %425 = vmatprep.mubr.f32.mxu0 0.0
    %426 = vmatmul.mubr.f32.gmra.mxu0 %v160
    %v427 = vpop.f32.mrf.mxu0
    %v428 = vadd.f32 %v147, %v427
    %v429 = vpop.f32.mrf.mxu0
    %430 = vmatprep.mubr.f32.mxu0 0.0
    %431 = vmatmul.mubr.f32.gmra.mxu0 %v163
    %v432 = vpop.f32.mrf.mxu0
    %v433 = vadd.f32 %v147, %v432
    %v434 = vpop.f32.mrf.mxu0
    %435 = vmatprep.mubr.f32.mxu0 0.0
    %436 = vmatmul.mubr.f32.gmra.mxu0 %v166
    %v437 = vpop.f32.mrf.mxu0
    %v438 = vadd.f32 %v147, %v437
    %v439 = vpop.f32.mrf.mxu0
    %440 = vmatprep.mubr.f32.mxu0 0.0
    %441 = vmatmul.mubr.f32.gmra.mxu0 %v169
    %v442 = vpop.f32.mrf.mxu0
    %v443 = vadd.f32 %v147, %v442
    %v444 = vpop.f32.mrf.mxu0
    %445 = vmatprep.mubr.f32.mxu0 0.0
    %446 = vmatmul.mubr.f32.gmra.mxu0 %v172
    %v447 = vpop.f32.mrf.mxu0
    %v448 = vadd.f32 %v147, %v447
    %v449 = vpop.f32.mrf.mxu0
    %450 = vmatprep.mubr.f32.mxu0 0.0
    %451 = vmatmul.mubr.f32.gmra.mxu0 %v175
    %v452 = vpop.f32.mrf.mxu0
    %v453 = vadd.f32 %v147, %v452
    %v454 = vpop.f32.mrf.mxu0
    %455 = vmatprep.mubr.f32.mxu0 0.0
    %456 = vmatmul.mubr.f32.gmra.mxu0 %v178
    %v457 = vpop.f32.mrf.mxu0
    %v458 = vadd.f32 %v147, %v457
    %v459 = vpop.f32.mrf.mxu0
    %460 = vmatprep.mubr.f32.mxu0 0.0
    %461 = vmatmul.mubr.f32.gmra.mxu0 %v181
    %v462 = vpop.f32.mrf.mxu0
    %v463 = vadd.f32 %v147, %v462
    %v464 = vpop.f32.mrf.mxu0
    %465 = vmatprep.mubr.f32.mxu0 0.0
    %466 = vmatmul.mubr.f32.gmra.mxu0 %v184
    %v467 = vpop.f32.mrf.mxu0
    %v468 = vadd.f32 %v147, %v467
    %v469 = vpop.f32.mrf.mxu0
    %470 = vmatprep.mubr.f32.mxu0 0.0
    %471 = vmatmul.mubr.f32.gmra.mxu0 %v187
    %v472 = vpop.f32.mrf.mxu0
    %v473 = vadd.f32 %v147, %v472
    %v474 = vpop.f32.mrf.mxu0
    %475 = vmatprep.mubr.f32.mxu0 0.0
    %476 = vmatmul.mubr.f32.gmra.mxu0 %v190
    %v477 = vpop.f32.mrf.mxu0
    %v478 = vadd.f32 %v147, %v477
    %v479 = vpop.f32.mrf.mxu0
    %480 = vmatprep.mubr.f32.mxu0 0.0
    %481 = vmatmul.mubr.f32.gmra.mxu0 %v193
    %v482 = vpop.f32.mrf.mxu0
    %v483 = vadd.f32 %v147, %v482
    %v484 = vpop.f32.mrf.mxu0
    %485 = vmatprep.mubr.f32.mxu0 0.0
    %486 = vmatmul.mubr.f32.gmra.mxu0 %v196
    %v487 = vpop.f32.mrf.mxu0
    %v488 = vadd.f32 %v147, %v487
    %v489 = vpop.f32.mrf.mxu0
    %490 = vmatprep.mubr.f32.mxu0 0.0
    %491 = vmatmul.mubr.f32.gmra.mxu0 %v199
    %v492 = vpop.f32.mrf.mxu0
    %v493 = vadd.f32 %v147, %v492
    %v494 = vpop.f32.mrf.mxu0
    %495 = vmatprep.mubr.f32.mxu0 0.0
    %496 = vmatmul.mubr.f32.gmra.mxu0 %v202
    %v497 = vpop.f32.mrf.mxu0
    %v498 = vadd.f32 %v147, %v497
    %v499 = vpop.f32.mrf.mxu0
    %500 = vmatprep.mubr.f32.mxu0 0.0
    %501 = vmatmul.mubr.f32.gmra.mxu0 %v205
    %v502 = vpop.f32.mrf.mxu0
    %v503 = vadd.f32 %v147, %v502
    %v504 = vpop.f32.mrf.mxu0
    %505 = vmatprep.mubr.f32.mxu0 0.0
    %506 = vmatmul.mubr.f32.gmra.mxu0 %v208
    %v507 = vpop.f32.mrf.mxu0
    %v508 = vadd.f32 %v147, %v507
    %v509 = vpop.f32.mrf.mxu0
    %510 = vmatprep.mubr.f32.mxu0 0.0
    %511 = vmatmul.mubr.f32.gmra.mxu0 %v211
    %v512 = vpop.f32.mrf.mxu0
    %v513 = vadd.f32 %v147, %v512
    %v514 = vpop.f32.mrf.mxu0
    %515 = vmatprep.mubr.f32.mxu0 0.0
    %516 = vmatmul.mubr.f32.gmra.mxu0 %v214
    %v517 = vpop.f32.mrf.mxu0
    %v518 = vadd.f32 %v147, %v517
    %v519 = vpop.f32.mrf.mxu0
    %520 = vmatprep.mubr.f32.mxu0 0.0
    %521 = vmatmul.mubr.f32.gmra.mxu0 %v217
    %v522 = vpop.f32.mrf.mxu0
    %v523 = vadd.f32 %v147, %v522
    %v524 = vpop.f32.mrf.mxu0
    %525 = vmatprep.mubr.f32.mxu0 0.0
    %526 = vmatmul.mubr.f32.gmra.mxu0 %v220
    %v527 = vpop.f32.mrf.mxu0
    %v528 = vadd.f32 %v147, %v527
    %v529 = vpop.f32.mrf.mxu0
    %530 = vmatprep.mubr.f32.mxu0 0.0
    %531 = vmatmul.mubr.f32.gmra.mxu0 %v223
    %v532 = vpop.f32.mrf.mxu0
    %v533 = vadd.f32 %v147, %v532
    %v534 = vpop.f32.mrf.mxu0
    %535 = vmatprep.mubr.f32.mxu0 0.0
    %536 = vmatmul.mubr.f32.gmra.mxu0 %v226
    %v537 = vpop.f32.mrf.mxu0
    %v538 = vadd.f32 %v147, %v537
    %v539 = vpop.f32.mrf.mxu0
    %540 = vmatprep.mubr.f32.mxu0 0.0
    %541 = vmatmul.mubr.f32.gmra.mxu0 %v229
    %v542 = vpop.f32.mrf.mxu0
    %v543 = vadd.f32 %v147, %v542
    %v544 = vpop.f32.mrf.mxu0
    %545 = vmatprep.mubr.f32.mxu0 0.0
    %546 = vmatmul.mubr.f32.gmra.mxu0 %v232
    %v547 = vpop.f32.mrf.mxu0
    %v548 = vadd.f32 %v147, %v547
    %v549 = vpop.f32.mrf.mxu0
    %550 = vmatprep.mubr.f32.mxu0 0.0
    %551 = vmatmul.mubr.f32.gmra.mxu0 %v235
    %v552 = vpop.f32.mrf.mxu0
    %v553 = vadd.f32 %v147, %v552
    %v554 = vpop.f32.mrf.mxu0
    %555 = vmatprep.mubr.f32.mxu0 0.0
    %556 = vmatmul.mubr.f32.gmra.mxu0 %v238
    %v557 = vpop.f32.mrf.mxu0
    %v558 = vadd.f32 %v147, %v557
    %v559 = vpop.f32.mrf.mxu0
    %560 = vmatprep.mubr.f32.mxu0 0.0
    %561 = vmatmul.mubr.f32.gmra.mxu0 %v241
    %v562 = vpop.f32.mrf.mxu0
    %v563 = vadd.f32 %v147, %v562
    %v564 = vpop.f32.mrf.mxu0
    %565 = vmatprep.mubr.f32.mxu0 0.0
    %566 = vmatmul.mubr.f32.gmra.mxu0 %v244
    %v567 = vpop.f32.mrf.mxu0
    %v568 = vadd.f32 %v147, %v567
    %v569 = vpop.f32.mrf.mxu0
    %570 = vmatprep.mubr.f32.mxu0 0.0
    %571 = vmatmul.mubr.f32.gmra.mxu0 %v247
    %v572 = vpop.f32.mrf.mxu0
    %v573 = vadd.f32 %v147, %v572
    %v574 = vpop.f32.mrf.mxu0
    %575 = vmatprep.mubr.f32.mxu0 0.0
    %576 = vmatmul.mubr.f32.gmra.mxu0 %v250
    %v577 = vpop.f32.mrf.mxu0
    %v578 = vadd.f32 %v147, %v577
    %v579 = vpop.f32.mrf.mxu0
    %580 = vmatprep.mubr.f32.mxu0 0.0
    %581 = vmatmul.mubr.f32.gmra.mxu0 %v253
    %v582 = vpop.f32.mrf.mxu0
    %v583 = vadd.f32 %v147, %v582
    %v584 = vpop.f32.mrf.mxu0
    %585 = vmatprep.mubr.f32.mxu0 0.0
    %586 = vmatmul.mubr.f32.gmra.mxu0 %v256
    %v587 = vpop.f32.mrf.mxu0
    %v588 = vadd.f32 %v147, %v587
    %v589 = vpop.f32.mrf.mxu0
    %590 = vmatprep.mubr.f32.mxu0 0.0
    %591 = vmatmul.mubr.f32.gmra.mxu0 %v259
    %v592 = vpop.f32.mrf.mxu0
    %v593 = vadd.f32 %v147, %v592
    %v594 = vpop.f32.mrf.mxu0
    %595 = vmatprep.mubr.f32.mxu0 0.0
    %596 = vmatmul.mubr.f32.gmra.mxu0 %v262
    %v597 = vpop.f32.mrf.mxu0
    %v598 = vadd.f32 %v147, %v597
    %v599 = vpop.f32.mrf.mxu0
    %600 = vmatprep.mubr.f32.mxu0 0.0
    %601 = vmatmul.mubr.f32.gmra.mxu0 %v265
    %v602 = vpop.f32.mrf.mxu0
    %v603 = vadd.f32 %v147, %v602
    %v604 = vpop.f32.mrf.mxu0
    %605 = vmatprep.mubr.f32.mxu0 0.0
    %606 = vmatmul.mubr.f32.gmra.mxu0 %v268
    %v607 = vpop.f32.mrf.mxu0
    %v608 = vadd.f32 %v147, %v607
    %v609 = vpop.f32.mrf.mxu0
    %610 = vmatprep.mubr.f32.mxu0 0.0
    %611 = vmatmul.mubr.f32.gmra.mxu0 %v271
    %v612 = vpop.f32.mrf.mxu0
    %v613 = vadd.f32 %v147, %v612
    %v614 = vpop.f32.mrf.mxu0
    %615 = vmatprep.mubr.f32.mxu0 0.0
    %616 = vmatmul.mubr.f32.gmra.mxu0 %v274
    %v617 = vpop.f32.mrf.mxu0
    %v618 = vadd.f32 %v147, %v617
    %v619 = vpop.f32.mrf.mxu0
    %620 = vmatprep.mubr.f32.mxu0 0.0
    %621 = vmatmul.mubr.f32.gmra.mxu0 %v277
    %v622 = vpop.f32.mrf.mxu0
    %v623 = vadd.f32 %v147, %v622
    %v624 = vpop.f32.mrf.mxu0
    %625 = vmatprep.mubr.f32.mxu0 0.0
    %626 = vmatmul.mubr.f32.gmra.mxu0 %v280
    %v627 = vpop.f32.mrf.mxu0
    %v628 = vadd.f32 %v147, %v627
    %v629 = vpop.f32.mrf.mxu0
    %630 = vmatprep.mubr.f32.mxu0 0.0
    %631 = vmatmul.mubr.f32.gmra.mxu0 %v283
    %v632 = vpop.f32.mrf.mxu0
    %v633 = vadd.f32 %v147, %v632
    %v634 = vpop.f32.mrf.mxu0
    %635 = vmatprep.mubr.f32.mxu0 0.0
    %636 = vmatmul.mubr.f32.gmra.mxu0 %v286
    %v637 = vpop.f32.mrf.mxu0
    %v638 = vadd.f32 %v147, %v637
    %v639 = vpop.f32.mrf.mxu0
    %640 = vmatprep.mubr.f32.mxu0 0.0
    %641 = vmatmul.mubr.f32.gmra.mxu0 %v289
    %v642 = vpop.f32.mrf.mxu0
    %v643 = vadd.f32 %v147, %v642
    %v644 = vpop.f32.mrf.mxu0
    %645 = vmatprep.mubr.f32.mxu0 0.0
    %646 = vmatmul.mubr.f32.gmra.mxu0 %v292
    %v647 = vpop.f32.mrf.mxu0
    %v648 = vadd.f32 %v147, %v647
    %v649 = vpop.f32.mrf.mxu0
    %650 = vmatprep.mubr.f32.mxu0 0.0
    %651 = vmatmul.mubr.f32.gmra.mxu0 %v295
    %v652 = vpop.f32.mrf.mxu0
    %v653 = vadd.f32 %v147, %v652
    %v654 = vpop.f32.mrf.mxu0
    %655 = vmatprep.mubr.f32.mxu0 0.0
    %656 = vmatmul.mubr.f32.gmra.mxu0 %v298
    %v657 = vpop.f32.mrf.mxu0
    %v658 = vadd.f32 %v147, %v657
    %v659 = vpop.f32.mrf.mxu0
    %660 = vmatprep.mubr.f32.mxu0 0.0
    %661 = vmatmul.mubr.f32.gmra.mxu0 %v301
    %v662 = vpop.f32.mrf.mxu0
    %v663 = vadd.f32 %v147, %v662
    %v664 = vpop.f32.mrf.mxu0
    %665 = vmatprep.mubr.f32.mxu0 0.0
    %666 = vmatmul.mubr.f32.gmra.mxu0 %v304
    %v667 = vpop.f32.mrf.mxu0
    %v668 = vadd.f32 %v147, %v667
    %v669 = vpop.f32.mrf.mxu0
    %670 = vmatprep.mubr.f32.mxu0 0.0
    %671 = vmatmul.mubr.f32.gmra.mxu0 %v307
    %v672 = vpop.f32.mrf.mxu0
    %v673 = vadd.f32 %v147, %v672
    %v674 = vpop.f32.mrf.mxu0
    %675 = vmatprep.mubr.f32.mxu0 0.0
    %676 = vmatmul.mubr.f32.gmra.mxu0 %v310
    %v677 = vpop.f32.mrf.mxu0
    %v678 = vadd.f32 %v147, %v677
    %v679 = vpop.f32.mrf.mxu0
    %680 = vmatprep.mubr.f32.mxu0 0.0
    %681 = vmatmul.mubr.f32.gmra.mxu0 %v313
    %v682 = vpop.f32.mrf.mxu0
    %v683 = vadd.f32 %v147, %v682
    %v684 = vpop.f32.mrf.mxu0
    %685 = vmatprep.mubr.f32.mxu0 0.0
    %686 = vmatmul.mubr.f32.gmra.mxu0 %v316
    %v687 = vpop.f32.mrf.mxu0
    %v688 = vadd.f32 %v147, %v687
    %v689 = vpop.f32.mrf.mxu0
    %690 = vmatprep.mubr.f32.mxu0 0.0
    %691 = vmatmul.mubr.f32.gmra.mxu0 %v319
    %v692 = vpop.f32.mrf.mxu0
    %v693 = vadd.f32 %v147, %v692
    %v694 = vpop.f32.mrf.mxu0
    %695 = vmatprep.mubr.f32.mxu0 0.0
    %696 = vmatmul.mubr.f32.gmra.mxu0 %v322
    %v697 = vpop.f32.mrf.mxu0
    %v698 = vadd.f32 %v147, %v697
    %v699 = vpop.f32.mrf.mxu0
    %700 = vmatprep.mubr.f32.mxu0 0.0
    %701 = vmatmul.mubr.f32.gmra.mxu0 %v325
    %v702 = vpop.f32.mrf.mxu0
    %v703 = vadd.f32 %v147, %v702
    %v704 = vpop.f32.mrf.mxu0
    %705 = vmatprep.mubr.f32.mxu0 0.0
    %706 = vmatmul.mubr.f32.gmra.mxu0 %v328
    %v707 = vpop.f32.mrf.mxu0
    %v708 = vadd.f32 %v147, %v707
    %v709 = vpop.f32.mrf.mxu0
    %710 = vmatprep.mubr.f32.mxu0 0.0
    %711 = vmatmul.mubr.f32.gmra.mxu0 %v331
    %v712 = vpop.f32.mrf.mxu0
    %v713 = vadd.f32 %v147, %v712
    %v714 = vpop.f32.mrf.mxu0
    %715 = vmatprep.mubr.f32.mxu0 0.0
    %716 = vmatmul.mubr.f32.gmra.mxu0 %v334
    %v717 = vpop.f32.mrf.mxu0
    %v718 = vadd.f32 %v147, %v717
    %v719 = vpop.f32.mrf.mxu0
    %720 = vmatprep.mubr.f32.mxu0 0.0
    %721 = vmatmul.mubr.f32.gmra.mxu0 %v337
    %v722 = vpop.f32.mrf.mxu0
    %v723 = vadd.f32 %v147, %v722
    %v724 = vpop.f32.mrf.mxu0
    %725 = vmatprep.mubr.f32.mxu0 0.0
    %726 = vmatmul.mubr.f32.gmra.mxu0 %v340
    %v727 = vpop.f32.mrf.mxu0
    %v728 = vadd.f32 %v147, %v727
    %v729 = vpop.f32.mrf.mxu0
    %730 = vdwg.mxu0
    %731 = vst [vmem:[%s4] sm:$0xff] %v413
    %732 = vst [vmem:[%s4 + $0x8] sm:$0xff] %v418
    %733 = vst [vmem:[%s4 + $0x10] sm:$0xff] %v423
    %734 = vst [vmem:[%s4 + $0x18] sm:$0xff] %v428
    %735 = vst [vmem:[%s4 + $0x20] sm:$0xff] %v433
    %736 = vst [vmem:[%s4 + $0x28] sm:$0xff] %v438
    %737 = vst [vmem:[%s4 + $0x30] sm:$0xff] %v443
    %738 = vst [vmem:[%s4 + $0x38] sm:$0xff] %v448
    %739 = vst [vmem:[%s4 + $0x40] sm:$0xff] %v453
    %740 = vst [vmem:[%s4 + $0x48] sm:$0xff] %v458
    %741 = vst [vmem:[%s4 + $0x50] sm:$0xff] %v463
    %742 = vst [vmem:[%s4 + $0x58] sm:$0xff] %v468
    %743 = vst [vmem:[%s4 + $0x60] sm:$0xff] %v473
    %744 = vst [vmem:[%s4 + $0x68] sm:$0xff] %v478
    %745 = vst [vmem:[%s4 + $0x70] sm:$0xff] %v483
    %746 = vst [vmem:[%s4 + $0x78] sm:$0xff] %v488
    %747 = vst [vmem:[%s4 + $0x80] sm:$0xff] %v493
    %748 = vst [vmem:[%s4 + $0x88] sm:$0xff] %v498
    %749 = vst [vmem:[%s4 + $0x90] sm:$0xff] %v503
    %750 = vst [vmem:[%s4 + $0x98] sm:$0xff] %v508
    %751 = vst [vmem:[%s4 + $0xa0] sm:$0xff] %v513
    %752 = vst [vmem:[%s4 + $0xa8] sm:$0xff] %v518
    %753 = vst [vmem:[%s4 + $0xb0] sm:$0xff] %v523
    %754 = vst [vmem:[%s4 + $0xb8] sm:$0xff] %v528
    %755 = vst [vmem:[%s4 + $0xc0] sm:$0xff] %v533
    %756 = vst [vmem:[%s4 + $0xc8] sm:$0xff] %v538
    %757 = vst [vmem:[%s4 + $0xd0] sm:$0xff] %v543
    %758 = vst [vmem:[%s4 + $0xd8] sm:$0xff] %v548
    %759 = vst [vmem:[%s4 + $0xe0] sm:$0xff] %v553
    %760 = vst [vmem:[%s4 + $0xe8] sm:$0xff] %v558
    %761 = vst [vmem:[%s4 + $0xf0] sm:$0xff] %v563
    %762 = vst [vmem:[%s4 + $0xf8] sm:$0xff] %v568
    %763 = vst [vmem:[%s4 + $0x100] sm:$0xff] %v573
    %764 = vst [vmem:[%s4 + $0x108] sm:$0xff] %v578
    %765 = vst [vmem:[%s4 + $0x110] sm:$0xff] %v583
    %766 = vst [vmem:[%s4 + $0x118] sm:$0xff] %v588
    %767 = vst [vmem:[%s4 + $0x120] sm:$0xff] %v593
    %768 = vst [vmem:[%s4 + $0x128] sm:$0xff] %v598
    %769 = vst [vmem:[%s4 + $0x130] sm:$0xff] %v603
    %770 = vst [vmem:[%s4 + $0x138] sm:$0xff] %v608
    %771 = vst [vmem:[%s4 + $0x140] sm:$0xff] %v613
    %772 = vst [vmem:[%s4 + $0x148] sm:$0xff] %v618
    %773 = vst [vmem:[%s4 + $0x150] sm:$0xff] %v623
    %774 = vst [vmem:[%s4 + $0x158] sm:$0xff] %v628
    %775 = vst [vmem:[%s4 + $0x160] sm:$0xff] %v633
    %776 = vst [vmem:[%s4 + $0x168] sm:$0xff] %v638
    %777 = vst [vmem:[%s4 + $0x170] sm:$0xff] %v643
    %778 = vst [vmem:[%s4 + $0x178] sm:$0xff] %v648
    %779 = vst [vmem:[%s4 + $0x180] sm:$0xff] %v653
    %780 = vst [vmem:[%s4 + $0x188] sm:$0xff] %v658
    %781 = vst [vmem:[%s4 + $0x190] sm:$0xff] %v663
    %782 = vst [vmem:[%s4 + $0x198] sm:$0xff] %v668
    %783 = vst [vmem:[%s4 + $0x1a0] sm:$0xff] %v673
    %784 = vst [vmem:[%s4 + $0x1a8] sm:$0xff] %v678
    %785 = vst [vmem:[%s4 + $0x1b0] sm:$0xff] %v683
    %786 = vst [vmem:[%s4 + $0x1b8] sm:$0xff] %v688
    %787 = vst [vmem:[%s4 + $0x1c0] sm:$0xff] %v693
    %788 = vst [vmem:[%s4 + $0x1c8] sm:$0xff] %v698
    %789 = vst [vmem:[%s4 + $0x1d0] sm:$0xff] %v703
    %790 = vst [vmem:[%s4 + $0x1d8] sm:$0xff] %v708
    %791 = vst [vmem:[%s4 + $0x1e0] sm:$0xff] %v713
    %792 = vst [vmem:[%s4 + $0x1e8] sm:$0xff] %v718
    %793 = vst [vmem:[%s4 + $0x1f0] sm:$0xff] %v723
    %794 = vst [vmem:[%s4 + $0x1f8] sm:$0xff] %v728
    // Predicated region
    $region26: #{ttq_conv2d.1} parent=1 // pred_check
      _
    $region27: #{ttq_conv2d.1} parent=1 // pred_check_branch
      %796 = sbr.rel (0) target = $region29
    $region28: #{ttq_conv2d.1} parent=1 // pred_region
      _
    $region29: #{ttq_conv2d.1} parent=1 // pred_fallthru
      _
    // Predicated region
    $region30: #{ttq_conv2d.1} parent=1 // pred_check
      _
    $region31: #{ttq_conv2d.1} parent=1 // pred_check_branch
      %798 = sbr.rel (0) target = $region33
    $region32: #{ttq_conv2d.1} parent=1 // pred_region
      _
    $region33: #{ttq_conv2d.1} parent=1 // pred_fallthru
      _
    %799 = vsyncpa [#allocation4], 1

</llo_original>
